<compile_context>
chip_gen: v6e
topology: v6e:2x2x1
jax: 0.10.0
libtpu: 0.0.40
codegen_flags: <defaults>
</compile_context>

<pallas_src>
import functools

import jax
import jax.numpy as jnp
from jax import lax
from jax.experimental import pallas as pl
from jax.experimental.pallas import tpu as pltpu

EPS = 1e-5  # PyTorch nn.GroupNorm default


def _sgn_kernel(x_ref, p_ref, cw_ref, cb_ref, o_ref, *, eps):
    # x_ref block: (Bn, C, HW) -- `Bn` whole samples.
    # p_ref:  (C, C) group-averaging matrix: 1/(Cg*HW) if channels share a
    #         group, else 0 (constant index_map -> DMA'd once, resident).
    # cw_ref/cb_ref: (1, C) fused scale / bias (GroupNorm affine folded with
    #         the extra gamma/beta).
    xb = x_ref[...].astype(jnp.float32)                            # (Bn, C, HW)

    # Single sweep over the block: per-channel sum and sum-of-squares.
    s = jnp.sum(xb, axis=-1)                                       # (Bn, C)
    ss = jnp.sum(xb * xb, axis=-1)                                 # (Bn, C)

    # Combine channels within each group on the MXU (idle otherwise).
    p = p_ref[...]                                                 # (C, C)
    mean_c = jnp.dot(s, p, preferred_element_type=jnp.float32)     # (Bn, C)
    ex2_c = jnp.dot(ss, p, preferred_element_type=jnp.float32)     # (Bn, C)
    var_c = jnp.maximum(ex2_c - mean_c * mean_c, 0.0)
    inv_c = lax.rsqrt(var_c + eps)                                 # (Bn, C)

    # Fold normalization + both affines into one per-channel scale/bias.
    scale = inv_c * cw_ref[...]                                    # (Bn, C)
    bias = cb_ref[...] - mean_c * scale                            # (Bn, C)

    y = xb * scale[:, :, None] + bias[:, :, None]                  # (Bn, C, HW)
    o_ref[...] = y.astype(o_ref.dtype)


def static_group_norm(x, gn_weight, gn_bias, gamma, beta, *, groups=8):
    """StaticGroupNorm forward: GroupNorm(x) * gamma + beta.

    x: (N, C, H, W); gn_weight/gn_bias: (C,); gamma/beta: (1, C, 1, 1).
    """
    N, C, H, W = x.shape
    G = groups
    assert C % G == 0, "channels must be divisible by groups"
    Cg = C // G
    HW = H * W

    # Lane-dense layout; keep the model dtype through the kernel.
    xr = x.reshape(N, C, HW)

    # Fold the two affines: y = xhat * (w * gamma) + (b * gamma + beta).
    g1 = gamma.reshape(C).astype(jnp.float32)
    b1 = beta.reshape(C).astype(jnp.float32)
    cw = (gn_weight.astype(jnp.float32) * g1).reshape(1, C)
    cb = (gn_bias.astype(jnp.float32) * g1 + b1).reshape(1, C)

    # Constant group-averaging matrix (built in plain JAX, loaded once).
    cidx = jnp.arange(C)
    same_group = (cidx[:, None] // Cg) == (cidx[None, :] // Cg)
    p_avg = jnp.where(same_group, 1.0 / float(Cg * HW), 0.0).astype(jnp.float32)

    # Block size: several whole samples per grid step, targeting ~1 MiB input
    # blocks. Double-buffered in+out footprint ~4x block bytes, comfortably
    # under the scoped VMEM default on v5e/v6e/v7x, so no vmem_limit override.
    itemsize = x.dtype.itemsize
    bytes_per_sample = C * HW * itemsize
    bn = max(1, min(N, (1 << 20) // max(bytes_per_sample, 1)))
    if N >= 2:
        bn = max(1, min(bn, N // 2))  # keep >=2 parallel grid steps for v7x
    while N % bn:                     # avoid partial (masked) trailing blocks
        bn -= 1
    grid = (N // bn,)

    x_spec = pl.BlockSpec((bn, C, HW), lambda i: (i, 0, 0))
    p_spec = pl.BlockSpec((C, C), lambda i: (0, 0))
    v_spec = pl.BlockSpec((1, C), lambda i: (0, 0))

    numel = N * C * HW
    cost = pl.CostEstimate(
        flops=6 * numel,
        transcendentals=N * C,
        bytes_accessed=2 * numel * itemsize + (C * C + 2 * C) * 4,
    )

    out = pl.pallas_call(
        functools.partial(_sgn_kernel, eps=EPS),
        out_shape=jax.ShapeDtypeStruct((N, C, HW), x.dtype),
        grid_spec=pltpu.PrefetchScalarGridSpec(
            num_scalar_prefetch=0,
            grid=grid,
            in_specs=[x_spec, p_spec, v_spec, v_spec],
            out_specs=x_spec,
        ),
        compiler_params=pltpu.CompilerParams(
            dimension_semantics=("parallel",),
        ),
        cost_estimate=cost,
    )(xr, p_avg, cw, cb)

    return out.reshape(N, C, H, W)


def _reference(x, gn_weight, gn_bias, gamma, beta, groups=8):
    N, C, H, W = x.shape
    G = groups
    xr = x.reshape(N, G, (C // G) * H * W).astype(jnp.float32)
    mean = xr.mean(-1, keepdims=True)
    var = ((xr - mean) ** 2).mean(-1, keepdims=True)
    xhat = ((xr - mean) / jnp.sqrt(var + EPS)).reshape(N, C, H, W)
    gn_out = xhat * gn_weight[None, :, None, None] + gn_bias[None, :, None, None]
    return gn_out * gamma + beta


if __name__ == "__main__":
    key = jax.random.PRNGKey(0)
    k_x, k_w, k_b, k_g, k_bt = jax.random.split(key, 5)

    N, C, H, W = 2, 16, 16, 16   # channels divisible by groups=8
    GROUPS = 8

    x = jax.random.normal(k_x, (N, C, H, W), dtype=jnp.float32)

    # Module __init__ gives: gn.weight = ones(C), gn.bias = zeros(C),
    # gamma = ones(1,C,1,1), beta = zeros(1,C,1,1). Perturb deterministically
    # so all affine paths are exercised.
    gn_weight = jnp.ones((C,), jnp.float32) + 0.1 * jax.random.normal(k_w, (C,))
    gn_bias = jnp.zeros((C,), jnp.float32) + 0.1 * jax.random.normal(k_b, (C,))
    gamma = jnp.ones((1, C, 1, 1), jnp.float32) + 0.1 * jax.random.normal(k_g, (1, C, 1, 1))
    beta = jnp.zeros((1, C, 1, 1), jnp.float32) + 0.1 * jax.random.normal(k_bt, (1, C, 1, 1))

    out = static_group_norm(x, gn_weight, gn_bias, gamma, beta, groups=GROUPS)
    out = jax.block_until_ready(out)

    ref = _reference(x, gn_weight, gn_bias, gamma, beta, groups=GROUPS)
    assert out.shape == (N, C, H, W)
    assert jnp.allclose(out, ref, atol=1e-4, rtol=1e-4)

    print("KERNEL_OK")
</pallas_src>

<mosaic_0001>
module attributes {stable_mosaic.version = 11 : i64} {
  func.func @_sgn_kernel(%arg0: i32, %arg1: memref<1x16x256xf32, #tpu.memory_space<vmem>>, %arg2: memref<16x16xf32, #tpu.memory_space<vmem>>, %arg3: memref<1x16xf32, #tpu.memory_space<vmem>>, %arg4: memref<1x16xf32, #tpu.memory_space<vmem>>, %arg5: memref<1x16x256xf32, #tpu.memory_space<vmem>>) attributes {dimension_semantics = [#tpu.dimension_semantics<parallel>], iteration_bounds = array<i64: 2>, scalar_prefetch = 0 : i64, scratch_operands = 0 : i64, tpu.core_type = #tpu.core_type<tc>, window_params = [{transform_indices = @transform_0, window_bounds = array<i64: 1, 16, 256>}, {pipeline_mode = #tpu.pipeline_mode<synchronous>, transform_indices = @transform_1, window_bounds = array<i64: 16, 16>}, {pipeline_mode = #tpu.pipeline_mode<synchronous>, transform_indices = @transform_2, window_bounds = array<i64: 1, 16>}, {pipeline_mode = #tpu.pipeline_mode<synchronous>, transform_indices = @transform_3, window_bounds = array<i64: 1, 16>}, {transform_indices = @transform_4, window_bounds = array<i64: 1, 16, 256>}]} {
    %c0 = arith.constant 0 : index
    %c0_0 = arith.constant 0 : index
    %c0_1 = arith.constant 0 : index
    %0 = vector.load %arg1[%c0, %c0_0, %c0_1] : memref<1x16x256xf32, #tpu.memory_space<vmem>>, vector<1x16x256xf32>
    %cst = arith.constant dense<0.000000e+00> : vector<1x16xf32>
    %1 = vector.multi_reduction <add>, %0, %cst [2] : vector<1x16x256xf32> to vector<1x16xf32>
    %2 = arith.mulf %0, %0 : vector<1x16x256xf32>
    %cst_2 = arith.constant dense<0.000000e+00> : vector<1x16xf32>
    %3 = vector.multi_reduction <add>, %2, %cst_2 [2] : vector<1x16x256xf32> to vector<1x16xf32>
    %c0_3 = arith.constant 0 : index
    %c0_4 = arith.constant 0 : index
    %4 = vector.load %arg2[%c0_3, %c0_4] : memref<16x16xf32, #tpu.memory_space<vmem>>, vector<16x16xf32>
    %cst_5 = arith.constant dense<0.000000e+00> : vector<1x16xf32>
    %5 = tpu.matmul %1, %4, %cst_5 {dimension_numbers = #tpu.dot_dimension_numbers<[1], [0], [0], [1], [0, 0, 1, 1], [], []>} : vector<1x16xf32>, vector<16x16xf32>, vector<1x16xf32> -> vector<1x16xf32>
    %cst_6 = arith.constant dense<0.000000e+00> : vector<1x16xf32>
    %6 = tpu.matmul %3, %4, %cst_6 {dimension_numbers = #tpu.dot_dimension_numbers<[1], [0], [0], [1], [0, 0, 1, 1], [], []>} : vector<1x16xf32>, vector<16x16xf32>, vector<1x16xf32> -> vector<1x16xf32>
    %7 = arith.mulf %5, %5 : vector<1x16xf32>
    %8 = arith.subf %6, %7 : vector<1x16xf32>
    %cst_7 = arith.constant 0.000000e+00 : f32
    %9 = vector.broadcast %cst_7 : f32 to vector<1x16xf32>
    %10 = arith.maximumf %8, %9 : vector<1x16xf32>
    %cst_8 = arith.constant 9.99999974E-6 : f32
    %11 = vector.broadcast %cst_8 : f32 to vector<1x16xf32>
    %12 = arith.addf %10, %11 : vector<1x16xf32>
    %13 = math.rsqrt %12 : vector<1x16xf32>
    %c0_9 = arith.constant 0 : index
    %c0_10 = arith.constant 0 : index
    %14 = vector.load %arg3[%c0_9, %c0_10] : memref<1x16xf32, #tpu.memory_space<vmem>>, vector<1x16xf32>
    %15 = arith.mulf %13, %14 : vector<1x16xf32>
    %c0_11 = arith.constant 0 : index
    %c0_12 = arith.constant 0 : index
    %16 = vector.load %arg4[%c0_11, %c0_12] : memref<1x16xf32, #tpu.memory_space<vmem>>, vector<1x16xf32>
    %17 = arith.mulf %5, %15 : vector<1x16xf32>
    %18 = arith.subf %16, %17 : vector<1x16xf32>
    %19 = vector.shape_cast %15 : vector<1x16xf32> to vector<1x16x1xf32>
    %20 = vector.broadcast %19 : vector<1x16x1xf32> to vector<1x16x256xf32>
    %21 = arith.mulf %0, %20 : vector<1x16x256xf32>
    %22 = vector.shape_cast %18 : vector<1x16xf32> to vector<1x16x1xf32>
    %23 = vector.broadcast %22 : vector<1x16x1xf32> to vector<1x16x256xf32>
    %24 = arith.addf %21, %23 : vector<1x16x256xf32>
    %c0_13 = arith.constant 0 : index
    %c0_14 = arith.constant 0 : index
    %c0_15 = arith.constant 0 : index
    %25 = vector.load %arg5[%c0_13, %c0_14, %c0_15] : memref<1x16x256xf32, #tpu.memory_space<vmem>>, vector<1x16x256xf32>
    tpu.vector_store %arg5[%c0_13, %c0_14, %c0_15], %24 {strides = array<i32>} : memref<1x16x256xf32, #tpu.memory_space<vmem>>, vector<1x16x256xf32>,
    return
  }
  func.func @transform_0(%arg0: i32) -> (i32, i32, i32) {
    %c0_i32 = arith.constant 0 : i32
    %c0_i32_0 = arith.constant 0 : i32
    %c0_i32_1 = arith.constant 0 : i32
    return %arg0, %c0_i32, %c0_i32_0 : i32, i32, i32
  }
  func.func @transform_1(%arg0: i32) -> (i32, i32) {
    %c0_i32 = arith.constant 0 : i32
    %c0_i32_0 = arith.constant 0 : i32
    %c0_i32_1 = arith.constant 0 : i32
    return %c0_i32, %c0_i32_0 : i32, i32
  }
  func.func @transform_2(%arg0: i32) -> (i32, i32) {
    %c0_i32 = arith.constant 0 : i32
    %c0_i32_0 = arith.constant 0 : i32
    %c0_i32_1 = arith.constant 0 : i32
    return %c0_i32, %c0_i32_0 : i32, i32
  }
  func.func @transform_3(%arg0: i32) -> (i32, i32) {
    %c0_i32 = arith.constant 0 : i32
    %c0_i32_0 = arith.constant 0 : i32
    %c0_i32_1 = arith.constant 0 : i32
    return %c0_i32, %c0_i32_0 : i32, i32
  }
  func.func @transform_4(%arg0: i32) -> (i32, i32, i32) {
    %c0_i32 = arith.constant 0 : i32
    %c0_i32_0 = arith.constant 0 : i32
    %c0_i32_1 = arith.constant 0 : i32
    return %arg0, %c0_i32, %c0_i32_0 : i32, i32, i32
  }
}

</mosaic_0001>

<llo_original>
// kernel: tpu_custom_call.1
$region0: #{tpu_custom_call.1}
  #allocation0 [shape = 'u32[]', space=smem, size = 0x4, offset = 0x4, fixed_abs, tag = 'smem constant byte address 0x4 - core index']
  #allocation1 [shape = 'u32[144,128]{1,0:T(1,128)}', space=vmem, size = 0x12000, scoped, tag = 'internal scratch']
  %s0 = inlined_call_operand.hbm [shape: f32[2,16,256], index: 0, kind: input, shape index: {}]
  %s1 = inlined_call_operand.hbm [shape: f32[16,16], index: 1, kind: input, shape index: {}]
  %s2 = inlined_call_operand.vmem [shape: f32[1,16], index: 2, kind: input, shape index: {}]
  %s3 = inlined_call_operand.vmem [shape: f32[1,16], index: 3, kind: input, shape index: {}]
  %s4 = inlined_call_operand.hbm [shape: f32[2,16,256], index: 4, kind: output, shape index: {}]
  %s5 = sld [smem:[#allocation0]]
  $region57: #{tpu_custom_call.1} parent=0
    _
  %s7 = ssub.s32 1, %s5
  %s8 = scalar_select 0, %s7, %s5
  $region1: #{tpu_custom_call.1} parent=0
    #allocation2 [shape = 'u8[32768]{0}', space=vmem, size = 0x8000, scoped, tag = 'input window, operand 0']
    #allocation3 [shape = 's32[2]{0}', space=sflag, size = 0x8, scoped, tag = 'scoped memory for tpu_custom_call.1']
    #allocation4 [shape = 's32[2]{0}', space=sflag, size = 0x8, scoped, tag = 'scoped memory for tpu_custom_call.1']
    #allocation5 [shape = 'u8[8192]{0}', space=vmem, size = 0x2000, scoped, tag = 'input window, operand 1, single buffered']
    #allocation6 [shape = 's32[1]{0}', space=sflag, size = 0x4, scoped, tag = 'scoped memory for tpu_custom_call.1']
    #allocation7 [shape = 'u8[32768]{0}', space=vmem, size = 0x8000, scoped, tag = 'output window, operand 0']
    %9 = vsyncpa [#allocation3], 0
    %s10 = scalar_lea.sflag [#allocation3], 1
    %11 = vsyncpa %s10, 0
    %12 = vsyncpa [#allocation6], 0
    %13 = vsyncpa [#allocation4], 0
    %s14 = scalar_lea.sflag [#allocation4], 1
    %15 = vsyncpa %s14, 0
    loop: start=0, step=1, limit=4
    $region2: #{tpu_custom_call.1} parent=1 // loop_pre_header
      _
    $region3: #{tpu_custom_call.1} parent=1 // loop_header
      %s17 = sphi 0, %s21
      %p18 = scmp.ge.s32.totalorder %s17, 4
      %s27 = sphi 0, %s29
      %s30 = sphi 0, %s27
      %s31 = sphi 0, %s30
      %s47 = sphi 0, %s31
      %s51 = sphi 0, %s51
      %s53 = sphi 0, %s51
      %s54 = sphi 0, %s53
      %s68 = sphi 0, %s54
      %s72 = sphi 0, %s72
      %s74 = sphi 0, %s72
      %s75 = sphi 0, %s74
      %s89 = sphi 0, %s75
      %s93 = sphi 0, %s93
      %s95 = sphi 0, %s93
      %s96 = sphi 0, %s95
      %s110 = sphi 0, %s96
      %s116 = sphi 0, %s118
      %s119 = sphi 0, %s116
      %s120 = sphi 0, %s119
      %s136 = sphi 0, %s120
    $region4: #{tpu_custom_call.1} parent=1 // loop_header_branch
      %20 = sbr.rel (%p18) target = $region8
    $region5: #{tpu_custom_call.1} parent=1 // loop_body
      %s22 = ssub.s32 %s17, 1
      %s23 = ssub.s32 %s17, 2
      %s24 = sadd.s32 %s17, 1
      %s25 = ssub.s32 %s17, %s24
      %p26 = scmp.eq.s32.totalorder %s25, 0
      %s28 = sadd.s32 %s27, 1
      %s29 = scalar_select %p26, %s27, %s28
      %p32 = pneg %p26
      %p33 = scmp.eq.s32.totalorder %s17, 1
      %p34 = por %p32, %p33
      %p35 = scmp.ne.s32.totalorder %s27, %s30
      %p36 = scmp.eq.s32.totalorder %s17, 0
      %p37 = por %p35, %p36
      %p38 = scmp.ne.s32.totalorder %s27, %s30
      %p39 = scmp.eq.s32.totalorder %s22, 1
      %p40 = por %p38, %p39
      %p41 = scmp.ne.s32.totalorder %s30, %s31
      %p42 = scmp.eq.s32.totalorder %s22, 0
      %p43 = por %p41, %p42
      %p44 = scmp.ne.s32.totalorder %s30, %s31
      %p45 = scmp.eq.s32.totalorder %s23, 1
      %p46 = por %p44, %p45
      %p48 = scmp.ne.s32.totalorder %s31, %s47
      %p49 = scmp.eq.s32.totalorder %s23, 0
      %p50 = por %p48, %p49
      %s52 = sadd.s32 %s51, 1
      %p55 = scmp.eq.s32.totalorder %s17, 1
      %p56 = scmp.ne.s32.totalorder %s51, %s53
      %p57 = scmp.eq.s32.totalorder %s17, 0
      %p58 = por %p56, %p57
      %p59 = scmp.ne.s32.totalorder %s51, %s53
      %p60 = scmp.eq.s32.totalorder %s22, 1
      %p61 = por %p59, %p60
      %p62 = scmp.ne.s32.totalorder %s53, %s54
      %p63 = scmp.eq.s32.totalorder %s22, 0
      %p64 = por %p62, %p63
      %p65 = scmp.ne.s32.totalorder %s53, %s54
      %p66 = scmp.eq.s32.totalorder %s23, 1
      %p67 = por %p65, %p66
      %p69 = scmp.ne.s32.totalorder %s54, %s68
      %p70 = scmp.eq.s32.totalorder %s23, 0
      %p71 = por %p69, %p70
      %s73 = sadd.s32 %s72, 1
      %p76 = scmp.eq.s32.totalorder %s17, 1
      %p77 = scmp.ne.s32.totalorder %s72, %s74
      %p78 = scmp.eq.s32.totalorder %s17, 0
      %p79 = por %p77, %p78
      %p80 = scmp.ne.s32.totalorder %s72, %s74
      %p81 = scmp.eq.s32.totalorder %s22, 1
      %p82 = por %p80, %p81
      %p83 = scmp.ne.s32.totalorder %s74, %s75
      %p84 = scmp.eq.s32.totalorder %s22, 0
      %p85 = por %p83, %p84
      %p86 = scmp.ne.s32.totalorder %s74, %s75
      %p87 = scmp.eq.s32.totalorder %s23, 1
      %p88 = por %p86, %p87
      %p90 = scmp.ne.s32.totalorder %s75, %s89
      %p91 = scmp.eq.s32.totalorder %s23, 0
      %p92 = por %p90, %p91
      %s94 = sadd.s32 %s93, 1
      %p97 = scmp.eq.s32.totalorder %s17, 1
      %p98 = scmp.ne.s32.totalorder %s93, %s95
      %p99 = scmp.eq.s32.totalorder %s17, 0
      %p100 = por %p98, %p99
      %p101 = scmp.ne.s32.totalorder %s93, %s95
      %p102 = scmp.eq.s32.totalorder %s22, 1
      %p103 = por %p101, %p102
      %p104 = scmp.ne.s32.totalorder %s95, %s96
      %p105 = scmp.eq.s32.totalorder %s22, 0
      %p106 = por %p104, %p105
      %p107 = scmp.ne.s32.totalorder %s95, %s96
      %p108 = scmp.eq.s32.totalorder %s23, 1
      %p109 = por %p107, %p108
      %p111 = scmp.ne.s32.totalorder %s96, %s110
      %p112 = scmp.eq.s32.totalorder %s23, 0
      %p113 = por %p111, %p112
      %s114 = ssub.s32 %s17, %s24
      %p115 = scmp.eq.s32.totalorder %s114, 0
      %s117 = sadd.s32 %s116, 1
      %s118 = scalar_select %p115, %s116, %s117
      %p121 = pneg %p115
      %p122 = scmp.eq.s32.totalorder %s17, 1
      %p123 = por %p121, %p122
      %p124 = scmp.ne.s32.totalorder %s116, %s119
      %p125 = scmp.eq.s32.totalorder %s17, 0
      %p126 = por %p124, %p125
      %p127 = scmp.ne.s32.totalorder %s116, %s119
      %p128 = scmp.eq.s32.totalorder %s22, 1
      %p129 = por %p127, %p128
      %p130 = scmp.ne.s32.totalorder %s119, %s120
      %p131 = scmp.eq.s32.totalorder %s22, 0
      %p132 = por %p130, %p131
      %p133 = scmp.ne.s32.totalorder %s119, %s120
      %p134 = scmp.eq.s32.totalorder %s23, 1
      %p135 = por %p133, %p134
      %p137 = scmp.ne.s32.totalorder %s120, %s136
      %p138 = scmp.eq.s32.totalorder %s23, 0
      %p139 = por %p137, %p138
      %p140 = scmp.le.s32.totalorder 1, %s17
      %p141 = scmp.lt.s32.totalorder %s17, 3
      %p142 = pnand %p140, %p141
      %p143 = pneg %p142
      // Predicated region
      $region9: #{tpu_custom_call.1} parent=5 // pred_check
        _
      $region10: #{tpu_custom_call.1} parent=5 // pred_check_branch
        %145 = sbr.rel (%p142) target = $region12
      $region11: #{tpu_custom_call.1} parent=5 // pred_region
        %s146 = ssub.s32 %s17, 1
        // Predicated region
        $region13: #{tpu_custom_call.1} parent=11 // pred_check
          %p147 = pneg %p64
        $region14: #{tpu_custom_call.1} parent=11 // pred_check_branch
          %149 = sbr.rel (%p147) target = $region16
        $region15: #{tpu_custom_call.1} parent=11 // pred_region
          %s151 = ssub.s32 256, 256
          %152 = vsyncadd [#allocation6], %s151
          %s153 = sshll.u32 [#allocation5], 4
          %s154 = int_to_ptr.vmem [resolvable:$true] %s153
          %159 = dma.hbm_to_vmem [thread:$0]  %s1, 256, %s154, [#allocation6], 128, 128, 8
        $region16: #{tpu_custom_call.1} parent=11 // pred_fallthru
          _
        // Predicated region
        $region17: #{tpu_custom_call.1} parent=11 // pred_check
          %p160 = pneg %p85
        $region18: #{tpu_custom_call.1} parent=11 // pred_check_branch
          %162 = sbr.rel (%p160) target = $region20
        $region19: #{tpu_custom_call.1} parent=11 // pred_region
          _
        $region20: #{tpu_custom_call.1} parent=11 // pred_fallthru
          _
        // Predicated region
        $region21: #{tpu_custom_call.1} parent=11 // pred_check
          %p163 = pneg %p106
        $region22: #{tpu_custom_call.1} parent=11 // pred_check_branch
          %165 = sbr.rel (%p163) target = $region24
        $region23: #{tpu_custom_call.1} parent=11 // pred_region
          _
        $region24: #{tpu_custom_call.1} parent=11 // pred_fallthru
          _
      $region12: #{tpu_custom_call.1} parent=5 // pred_fallthru
        _
      %p166 = scmp.lt.s32.totalorder %s17, 2
      // Predicated region
      $region25: #{tpu_custom_call.1} parent=5 // pred_check
        %p167 = pneg %p166
      $region26: #{tpu_custom_call.1} parent=5 // pred_check_branch
        %169 = sbr.rel (%p167) target = $region28
      $region27: #{tpu_custom_call.1} parent=5 // pred_region
        // Predicated region
        $region29: #{tpu_custom_call.1} parent=27 // pred_check
          %p170 = pneg %p37
        $region30: #{tpu_custom_call.1} parent=27 // pred_check_branch
          %172 = sbr.rel (%p170) target = $region32
        $region31: #{tpu_custom_call.1} parent=27 // pred_region
          %s173 = sand.u32 %s27, 1
          %s174 = scalar_lea.sflag [#allocation3], %s173
          %s175 = sand.u32 %s27, 1
          %s176 = smul.addr %s175, 32
          %s177 = scalar_lea.vmem [#allocation2], %s176
          %s179 = ssub.s32 512, 512
          %180 = vsyncadd %s174, %s179
          %s181 = smul.addr %s17, 4
          %s182 = smul.addr %s181, 128
          %s183 = scalar_lea.hbm %s0, %s182
          %s184 = sshll.u32 %s177, 4
          %s185 = int_to_ptr.vmem [resolvable:$true] %s184
          %190 = dma.hbm_to_vmem [thread:$0]  %s183, 512, %s185, %s174, 256, 256, 16
        $region32: #{tpu_custom_call.1} parent=27 // pred_fallthru
          _
      $region28: #{tpu_custom_call.1} parent=5 // pred_fallthru
        _
      %p191 = scmp.le.s32.totalorder 1, %s17
      %p192 = scmp.lt.s32.totalorder %s17, 3
      %p193 = pnand %p191, %p192
      %p194 = pneg %p193
      // Predicated region
      $region33: #{tpu_custom_call.1} parent=5 // pred_check
        _
      $region34: #{tpu_custom_call.1} parent=5 // pred_check_branch
        %196 = sbr.rel (%p193) target = $region36
      $region35: #{tpu_custom_call.1} parent=5 // pred_region
        %s197 = ssub.s32 %s17, 1
        %s198 = sand.u32 %s30, 1
        %s199 = scalar_lea.sflag [#allocation3], %s198
        %s200 = sand.u32 %s30, 1
        %s201 = smul.addr %s200, 32
        %s202 = scalar_lea.vmem [#allocation2], %s201
        // Predicated region
        $region37: #{tpu_custom_call.1} parent=35 // pred_check
          %p203 = pneg %p43
        $region38: #{tpu_custom_call.1} parent=35 // pred_check_branch
          %205 = sbr.rel (%p203) target = $region40
        $region39: #{tpu_custom_call.1} parent=35 // pred_region
          %206 = dma.done %s199, 512
        $region40: #{tpu_custom_call.1} parent=35 // pred_fallthru
          _
        // Predicated region
        $region41: #{tpu_custom_call.1} parent=35 // pred_check
          %p207 = pneg %p64
        $region42: #{tpu_custom_call.1} parent=35 // pred_check_branch
          %209 = sbr.rel (%p207) target = $region44
        $region43: #{tpu_custom_call.1} parent=35 // pred_region
          %210 = dma.done [#allocation6], 256
        $region44: #{tpu_custom_call.1} parent=35 // pred_fallthru
          _
        %s211 = sand.u32 %s30, 1
        %s212 = scalar_lea.sflag [#allocation3], %s211
        %s213 = sand.u32 %s30, 1
        %s214 = smul.addr %s213, 32
        %s215 = scalar_lea.vmem [#allocation2], %s214
        %p216 = pneg %p43
        %p217 = pneg %p40
        %p218 = pneg %p64
        %p219 = pneg %p61
        %p220 = pneg %p85
        %p221 = pneg %p82
        %p222 = pneg %p106
        %p223 = pneg %p103
        %p224 = pneg %p132
        %p225 = pneg %p129
        %s226 = sand.u32 %s119, 1
        %s227 = scalar_lea.sflag [#allocation4], %s226
        %s228 = sand.u32 %s119, 1
        %s229 = smul.addr %s228, 32
        %s230 = scalar_lea.vmem [#allocation7], %s229
        %v231 = vld [vmem:[%s202] sm:$0xff]
        %v232 = vld [vmem:[%s202 + $0x8] sm:$0xff]
        %v233 = vld [vmem:[%s202 + $0x10] sm:$0xff]
        %v234 = vld [vmem:[%s202 + $0x18] sm:$0xff]
        %v235 = vadd.f32 %v231, %v232
        %236 = vadd.xlane.f32.xlu0 %v235
        %v237 = vpop.xlane.xlu0 %236
        %v238 = vadd.f32 %v233, %v234
        %239 = vadd.xlane.f32.xlu0 %v238
        %v240 = vpop.xlane.xlu0 %239
        %v241 = vmul.f32 %v231, %v231
        %v242 = vmul.f32 %v232, %v232
        %v243 = vmul.f32 %v233, %v233
        %v244 = vmul.f32 %v234, %v234
        %v245 = vadd.f32 %v241, %v242
        %246 = vadd.xlane.f32.xlu0 %v245
        %v247 = vpop.xlane.xlu0 %246
        %v248 = vadd.f32 %v243, %v244
        %249 = vadd.xlane.f32.xlu0 %v248
        %v250 = vpop.xlane.xlu0 %249
        %v251 = vld [vmem:[#allocation5] sm:$0xff]
        %v252 = vld [vmem:[#allocation5 + $0x8] sm:$0xff]
        %v255 = vlaneseq
        %v256 = vand.u32 %v255, 127
        %v257 = vlaneseq
        %v258 = vshrl.u32 %v257, 7
        %v259 = vsub.s32 %v256, %v258
        %v260 = vrot.slane %v237, %v259
        %v261 = vadd.s32 %v256, 4294967288
        %v262 = vlaneseq
        %v263 = vshrl.u32 %v262, 7
        %v264 = vsub.s32 %v261, %v263
        %v265 = vrot.slane %v240, %v264
        %vm266 = vcmask 130112
        %v267 = vsel %vm266, %v265, %v260
        %vm268 = vcmask 130048
        %v269 = vsel %vm268, %v267, 0
        %271 = vmatprep.subr.mxu0 0.0
        %272 = vmatpush1.msra.mxu0 0.0
        %273 = vmatprep.subr.mxu0 0.0
        %274 = vmatpush1.msra.mxu0 0.0
        %275 = vmatprep.subr.mxu0 0.0
        %276 = vmatpush1.msra.mxu0 0.0
        %277 = vmatprep.subr.mxu0 0.0
        %278 = vmatpush1.msra.mxu0 0.0
        %279 = vmatprep.subr.mxu0 0.0
        %280 = vmatpush1.msra.mxu0 0.0
        %281 = vmatprep.subr.mxu0 0.0
        %282 = vmatpush1.msra.mxu0 0.0
        %283 = vmatprep.subr.mxu0 0.0
        %284 = vmatpush1.msra.mxu0 0.0
        %285 = vmatprep.subr.mxu0 0.0
        %286 = vmatpush1.msra.mxu0 0.0
        %287 = vmatprep.subr.mxu0 0.0
        %288 = vmatpush1.msra.mxu0 0.0
        %289 = vmatprep.subr.mxu0 0.0
        %290 = vmatpush1.msra.mxu0 0.0
        %291 = vmatprep.subr.mxu0 0.0
        %292 = vmatpush1.msra.mxu0 0.0
        %293 = vmatprep.subr.mxu0 0.0
        %294 = vmatpush1.msra.mxu0 0.0
        %295 = vmatprep.subr.mxu0 0.0
        %296 = vmatpush1.msra.mxu0 0.0
        %297 = vmatprep.subr.mxu0 0.0
        %298 = vmatpush1.msra.mxu0 0.0
        %299 = vmatprep.subr.mxu0 0.0
        %300 = vmatpush1.msra.mxu0 %v252
        %301 = vmatprep.subr.mxu0 0.0
        %302 = vmatpush1.msra.mxu0 %v251
        %303 = vmatprep.subr.mxu0 0.0
        %304 = vmatpush2.msra.mxu0 0.0
        %305 = vmatprep.subr.mxu0 0.0
        %306 = vmatpush2.msra.mxu0 0.0
        %307 = vmatprep.subr.mxu0 0.0
        %308 = vmatpush2.msra.mxu0 0.0
        %309 = vmatprep.subr.mxu0 0.0
        %310 = vmatpush2.msra.mxu0 0.0
        %311 = vmatprep.subr.mxu0 0.0
        %312 = vmatpush2.msra.mxu0 0.0
        %313 = vmatprep.subr.mxu0 0.0
        %314 = vmatpush2.msra.mxu0 0.0
        %315 = vmatprep.subr.mxu0 0.0
        %316 = vmatpush2.msra.mxu0 0.0
        %317 = vmatprep.subr.mxu0 0.0
        %318 = vmatpush2.msra.mxu0 0.0
        %319 = vmatprep.subr.mxu0 0.0
        %320 = vmatpush2.msra.mxu0 0.0
        %321 = vmatprep.subr.mxu0 0.0
        %322 = vmatpush2.msra.mxu0 0.0
        %323 = vmatprep.subr.mxu0 0.0
        %324 = vmatpush2.msra.mxu0 0.0
        %325 = vmatprep.subr.mxu0 0.0
        %326 = vmatpush2.msra.mxu0 0.0
        %327 = vmatprep.subr.mxu0 0.0
        %328 = vmatpush2.msra.mxu0 0.0
        %329 = vmatprep.subr.mxu0 0.0
        %330 = vmatpush2.msra.mxu0 0.0
        %331 = vmatprep.subr.mxu0 0.0
        %332 = vmatpush2.msra.mxu0 0.0
        %333 = vmatprep.subr.mxu0 0.0
        %334 = vmatpush2.msra.mxu0 0.0
        %335 = vmatprep.mubr.f32.mxu0 0.0
        %336 = vmatmul.mubr.f32.gmra.mxu0 %v269
        %v337 = vpop.f32.mrf.mxu0
        %v338 = vadd.f32 0.0, %v337
        %v339 = vpop.f32.mrf.mxu0
        %340 = vdwg.mxu0
        %v343 = vlaneseq
        %v344 = vshrl.u32 %v343, 7
        %v345 = vsub.s32 %v256, %v344
        %v346 = vrot.slane %v247, %v345
        %v347 = vlaneseq
        %v348 = vshrl.u32 %v347, 7
        %v349 = vsub.s32 %v261, %v348
        %v350 = vrot.slane %v250, %v349
        %v351 = vsel %vm266, %v350, %v346
        %v352 = vsel %vm268, %v351, 0
        %354 = vmatprep.subr.mxu0 0.0
        %355 = vmatpush1.msra.mxu0 0.0
        %356 = vmatprep.subr.mxu0 0.0
        %357 = vmatpush1.msra.mxu0 0.0
        %358 = vmatprep.subr.mxu0 0.0
        %359 = vmatpush1.msra.mxu0 0.0
        %360 = vmatprep.subr.mxu0 0.0
        %361 = vmatpush1.msra.mxu0 0.0
        %362 = vmatprep.subr.mxu0 0.0
        %363 = vmatpush1.msra.mxu0 0.0
        %364 = vmatprep.subr.mxu0 0.0
        %365 = vmatpush1.msra.mxu0 0.0
        %366 = vmatprep.subr.mxu0 0.0
        %367 = vmatpush1.msra.mxu0 0.0
        %368 = vmatprep.subr.mxu0 0.0
        %369 = vmatpush1.msra.mxu0 0.0
        %370 = vmatprep.subr.mxu0 0.0
        %371 = vmatpush1.msra.mxu0 0.0
        %372 = vmatprep.subr.mxu0 0.0
        %373 = vmatpush1.msra.mxu0 0.0
        %374 = vmatprep.subr.mxu0 0.0
        %375 = vmatpush1.msra.mxu0 0.0
        %376 = vmatprep.subr.mxu0 0.0
        %377 = vmatpush1.msra.mxu0 0.0
        %378 = vmatprep.subr.mxu0 0.0
        %379 = vmatpush1.msra.mxu0 0.0
        %380 = vmatprep.subr.mxu0 0.0
        %381 = vmatpush1.msra.mxu0 0.0
        %382 = vmatprep.subr.mxu0 0.0
        %383 = vmatpush1.msra.mxu0 %v252
        %384 = vmatprep.subr.mxu0 0.0
        %385 = vmatpush1.msra.mxu0 %v251
        %386 = vmatprep.subr.mxu0 0.0
        %387 = vmatpush2.msra.mxu0 0.0
        %388 = vmatprep.subr.mxu0 0.0
        %389 = vmatpush2.msra.mxu0 0.0
        %390 = vmatprep.subr.mxu0 0.0
        %391 = vmatpush2.msra.mxu0 0.0
        %392 = vmatprep.subr.mxu0 0.0
        %393 = vmatpush2.msra.mxu0 0.0
        %394 = vmatprep.subr.mxu0 0.0
        %395 = vmatpush2.msra.mxu0 0.0
        %396 = vmatprep.subr.mxu0 0.0
        %397 = vmatpush2.msra.mxu0 0.0
        %398 = vmatprep.subr.mxu0 0.0
        %399 = vmatpush2.msra.mxu0 0.0
        %400 = vmatprep.subr.mxu0 0.0
        %401 = vmatpush2.msra.mxu0 0.0
        %402 = vmatprep.subr.mxu0 0.0
        %403 = vmatpush2.msra.mxu0 0.0
        %404 = vmatprep.subr.mxu0 0.0
        %405 = vmatpush2.msra.mxu0 0.0
        %406 = vmatprep.subr.mxu0 0.0
        %407 = vmatpush2.msra.mxu0 0.0
        %408 = vmatprep.subr.mxu0 0.0
        %409 = vmatpush2.msra.mxu0 0.0
        %410 = vmatprep.subr.mxu0 0.0
        %411 = vmatpush2.msra.mxu0 0.0
        %412 = vmatprep.subr.mxu0 0.0
        %413 = vmatpush2.msra.mxu0 0.0
        %414 = vmatprep.subr.mxu0 0.0
        %415 = vmatpush2.msra.mxu0 0.0
        %416 = vmatprep.subr.mxu0 0.0
        %417 = vmatpush2.msra.mxu0 0.0
        %418 = vmatprep.mubr.f32.mxu0 0.0
        %419 = vmatmul.mubr.f32.gmra.mxu0 %v352
        %v420 = vpop.f32.mrf.mxu0
        %v421 = vadd.f32 0.0, %v420
        %v422 = vpop.f32.mrf.mxu0
        %423 = vdwg.mxu0
        %v424 = vmul.f32 %v338, %v338
        %v425 = vsub.f32 %v421, %v424
        %v426 = vmax.f32 %v425, 0.0
        %v427 = vadd.f32 %v426, 1e-05
        %v428 = vrsqrt.pop %v427
        %v429 = vld [vmem:[%s2] sm:$0x1]
        %v430 = vmul.f32 %v428, %v429
        %v431 = vld [vmem:[%s3] sm:$0x1]
        %v432 = vmul.f32 %v338, %v430
        %v433 = vsub.f32 %v431, %v432
        %v434 = vlaneseq
        %v435 = vshrl.u32 %v434, 7
        %v436 = vsub.s32 0, %v435
        %v437 = vrot.slane %v430, %v436
        %439 = vbcast.lane.b32.xlu0 %v437, 256
        %v440 = vpop.permute.xlu0 %439
        %s442 = sor.u32 256, 8
        %443 = vbcast.lane.b32.xlu0 %v437, %s442
        %v444 = vpop.permute.xlu0 %443
        %v445 = vmul.f32 %v231, %v440
        %v446 = vmul.f32 %v232, %v440
        %v447 = vmul.f32 %v233, %v444
        %v448 = vmul.f32 %v234, %v444
        %v449 = vlaneseq
        %v450 = vshrl.u32 %v449, 7
        %v451 = vsub.s32 0, %v450
        %v452 = vrot.slane %v433, %v451
        %454 = vbcast.lane.b32.xlu0 %v452, 256
        %v455 = vpop.permute.xlu0 %454
        %s457 = sor.u32 256, 8
        %458 = vbcast.lane.b32.xlu0 %v452, %s457
        %v459 = vpop.permute.xlu0 %458
        %v460 = vadd.f32 %v445, %v455
        %v461 = vadd.f32 %v446, %v455
        %v462 = vadd.f32 %v447, %v459
        %v463 = vadd.f32 %v448, %v459
        %464 = vst [vmem:[%s230] sm:$0xff] %v460
        %465 = vst [vmem:[%s230 + $0x8] sm:$0xff] %v461
        %466 = vst [vmem:[%s230 + $0x10] sm:$0xff] %v462
        %467 = vst [vmem:[%s230 + $0x18] sm:$0xff] %v463
        %s468 = sand.u32 %s119, 1
        %s469 = scalar_lea.sflag [#allocation4], %s468
        %s470 = sand.u32 %s119, 1
        %s471 = smul.addr %s470, 32
        %s472 = scalar_lea.vmem [#allocation7], %s471
        // Predicated region
        $region45: #{tpu_custom_call.1} parent=35 // pred_check
          %p473 = pneg %p129
        $region46: #{tpu_custom_call.1} parent=35 // pred_check_branch
          %475 = sbr.rel (%p473) target = $region48
        $region47: #{tpu_custom_call.1} parent=35 // pred_region
          %s477 = ssub.s32 512, 512
          %478 = vsyncadd %s469, %s477
          %s479 = smul.addr %s22, 4
          %s480 = smul.addr %s479, 128
          %s481 = scalar_lea.hbm %s4, %s480
          %s482 = sshll.u32 %s472, 4
          %s483 = int_to_ptr.vmem [resolvable:$true] %s482
          %488 = dma.vmem_to_hbm [thread:$0]  %s483, 512, %s481, %s469, 256, 256, 16
        $region48: #{tpu_custom_call.1} parent=35 // pred_fallthru
          _
      $region36: #{tpu_custom_call.1} parent=5 // pred_fallthru
        _
      %p489 = scmp.le.s32.totalorder 2, %s17
      // Predicated region
      $region49: #{tpu_custom_call.1} parent=5 // pred_check
        %p490 = pneg %p489
      $region50: #{tpu_custom_call.1} parent=5 // pred_check_branch
        %492 = sbr.rel (%p490) target = $region52
      $region51: #{tpu_custom_call.1} parent=5 // pred_region
        %s493 = ssub.s32 %s17, 2
        // Predicated region
        $region53: #{tpu_custom_call.1} parent=51 // pred_check
          %p494 = pneg %p135
        $region54: #{tpu_custom_call.1} parent=51 // pred_check_branch
          %496 = sbr.rel (%p494) target = $region56
        $region55: #{tpu_custom_call.1} parent=51 // pred_region
          %s497 = sand.u32 %s120, 1
          %s498 = scalar_lea.sflag [#allocation4], %s497
          %s499 = sand.u32 %s120, 1
          %s500 = smul.addr %s499, 32
          %s501 = scalar_lea.vmem [#allocation7], %s500
          %502 = dma.done %s498, 512
        $region56: #{tpu_custom_call.1} parent=51 // pred_fallthru
          _
      $region52: #{tpu_custom_call.1} parent=5 // pred_fallthru
        _
    $region6: #{tpu_custom_call.1} parent=1 // loop_footer
      %s21 = sadd.s32 1, %s17
    $region7: #{tpu_custom_call.1} parent=1 // loop_footer_branch
      %16 = sbr.rel target = $region3
    $region8: #{tpu_custom_call.1} parent=1 // loop_exit
      _
    %503 = vsyncpa [#allocation3], 1
    %s504 = scalar_lea.sflag [#allocation3], 1
    %505 = vsyncpa %s504, 1
    %506 = vsyncpa [#allocation6], 1
    %507 = vsyncpa [#allocation4], 1
    %s508 = scalar_lea.sflag [#allocation4], 1
    %509 = vsyncpa %s508, 1

</llo_original>
